<compile_context>
chip_gen: v5e
topology: v5e:2x2
jax: 0.10.0
libtpu: 0.0.40
codegen_flags: <defaults>
</compile_context>

<pallas_src>
import functools
import math

import jax
import jax.numpy as jnp
from jax import lax
from jax.experimental import pallas as pl
from jax.experimental.pallas import tpu as pltpu


_MASK_VALUE = -1e30                       # finite stand-in for -inf (avoids NaN rows)
_VMEM_FALLBACK_CAPACITY = 64 * 1024 * 1024  # conservative (v7x per-core VMEM)


# --------------------------------------------------------------------------- #
# Kernel bodies
# --------------------------------------------------------------------------- #
def _attention_tile(q, k, v, mask, inv_temperature, o_ref, attn_ref):
    """One (tq, Lk) attention tile: scores -> softmax -> PV matmul."""
    # Fold the 1/temperature scale into q (Lq*Dk work instead of Lq*Lk).
    qs = q * inv_temperature
    # q @ k^T without materializing k.T: contract the shared last dim.
    s = lax.dot_general(
        qs, k, (((1,), (1,)), ((), ())),
        preferred_element_type=jnp.float32,
    )  # (tq, Lk), f32
    if mask is not None:
        # mask is (1, Lk) for a key-padding mask or (tq, Lk) for a full mask;
        # jnp.where broadcasts it against the scores.  Nonzero == exclude,
        # matching torch's masked_fill(mask, -inf).
        s = jnp.where(mask != 0, _MASK_VALUE, s)
    s_max = jnp.max(s, axis=-1, keepdims=True)
    p = jnp.exp(s - s_max)
    denom = jnp.sum(p, axis=-1, keepdims=True)
    attn = p * pl.reciprocal(denom, approx=True)          # divide -> EUP reciprocal
    attn_ref[...] = attn.astype(attn_ref.dtype)
    out = jnp.dot(attn.astype(v.dtype), v, preferred_element_type=jnp.float32)
    o_ref[...] = out.astype(o_ref.dtype)


def _sdpa_kernel(q_ref, k_ref, v_ref, o_ref, attn_ref, *, inv_temperature):
    # Batch dim squeezed away by pl.Squeezed(): refs are 2-D tiles.
    _attention_tile(q_ref[...], k_ref[...], v_ref[...], None,
                    inv_temperature, o_ref, attn_ref)


def _sdpa_kernel_masked(q_ref, k_ref, v_ref, mask_ref, o_ref, attn_ref, *,
                        inv_temperature):
    _attention_tile(q_ref[...], k_ref[...], v_ref[...], mask_ref[...],
                    inv_temperature, o_ref, attn_ref)


# --------------------------------------------------------------------------- #
# Tiling / budgeting helpers
# --------------------------------------------------------------------------- #
def _vmem_capacity_bytes():
    """Per-core VMEM capacity, with a conservative fallback."""
    try:
        info = pltpu.get_tpu_info()
        for name in ("vmem_capacity_bytes", "vmem_size_bytes", "vmem_bytes"):
            val = getattr(info, name, None)
            if val:
                return int(val)
    except Exception:
        pass
    return _VMEM_FALLBACK_CAPACITY


def _vmem_budgets():
    """(tile_budget_bytes, vmem_limit_bytes), generation-aware.

    128 MiB parts (v5e/v6e) -> ~64 MiB tile budget, 80 MiB scoped limit.
    64 MiB part (v7x)       -> ~32 MiB tile budget, 40 MiB scoped limit.
    """
    cap = _vmem_capacity_bytes()
    return int(0.50 * cap), int(0.625 * cap)


def _min_q_tile(dtype):
    """Dtype-aware minimum Lq tile (sublane packing): 8 f32 / 16 bf16 / 32 int8."""
    bits = jnp.dtype(dtype).itemsize * 8
    if bits >= 32:
        return 8
    if bits == 16:
        return 16
    return 32


def _auto_q_tile(Lq, Lk, Dk, Dv, itemsize, attn_itemsize, mask_kind,
                 min_tile, budget):
    """Largest Lq tile (multiple of min_tile, dividing Lq) whose double-buffered
    working set plus live f32 temporaries fits the VMEM budget."""

    def footprint(tq):
        dbl = 2  # BlockSpec double-buffering
        kv = dbl * Lk * (Dk + Dv) * itemsize             # resident k, v
        qt = dbl * tq * Dk * itemsize                    # q tile
        ot = dbl * tq * Dv * itemsize                    # output tile
        at = dbl * tq * Lk * attn_itemsize               # attn tile
        if mask_kind == "full":
            mt = dbl * tq * Lk                           # int8 mask tile
        elif mask_kind == "key":
            mt = dbl * Lk                                # resident int8 key mask
        else:
            mt = 0
        # s, p, attn f32 temporaries coexist inside the kernel -> 3x, plus the
        # f32 output accumulator of the PV matmul.
        tmp = 3 * tq * Lk * 4 + tq * Dv * 4
        return kv + qt + ot + at + mt + tmp

    candidates = [c for c in (1024, 512, 256, 128, 64, 32, 16, 8)
                  if c >= min_tile and c <= Lq and Lq % c == 0]
    for tq in candidates:
        if footprint(tq) <= budget:
            return tq
    if candidates:
        # Nothing fits the budget: take the smallest legal divisor (NOT full Lq
        # -- that would blow up VMEM exactly where it is already tight).
        return candidates[-1]
    # Tiny / awkward Lq (Lq < min_tile or no aligned divisor): single tile.
    return Lq


def _normalize_mask(mask, B, Lq, Lk):
    """Classify the mask without materializing a (B, Lq, Lk) broadcast.

    Returns (kind, array) with kind in {"none", "key", "full"}:
      "key"  -> (B, 1, Lk) int8, resident per batch, broadcast in-kernel.
      "full" -> (B, Lq, Lk) int8, tiled like the scores.
    """
    if mask is None:
        return "none", None
    m = jnp.asarray(mask)
    if m.ndim == 2 and m.shape == (B, Lk):
        return "key", m.reshape(B, 1, Lk).astype(jnp.int8)
    if m.ndim == 3 and m.shape == (B, 1, Lk):
        return "key", m.astype(jnp.int8)
    if m.ndim == 3 and m.shape == (B, Lq, Lk):
        return "full", m.astype(jnp.int8)
    # Uncommon broadcastable shapes: fall back to a full mask.
    return "full", jnp.broadcast_to(m, (B, Lq, Lk)).astype(jnp.int8)


# --------------------------------------------------------------------------- #
# Public entry point
# --------------------------------------------------------------------------- #
def scaled_dot_product_attention(q, k, v, temperature, mask=None, *,
                                 q_tile=None, attn_dtype=None):
    """Pallas implementation of ScaledDotProductAttention.forward (eval mode).

    attn_dtype: dtype of the returned attention matrix; default q.dtype
      (matches torch).  Passing jnp.bfloat16 halves the dominant B*Lq*Lk HBM
      writeback stream when bit-parity of attn is not required.
    """
    B, Lq, Dk = q.shape
    Bk, Lk, Dk2 = k.shape
    Bv, Lk2, Dv = v.shape
    assert B == Bk == Bv and Dk == Dk2 and Lk == Lk2

    inv_temperature = 1.0 / float(temperature)
    itemsize = jnp.dtype(q.dtype).itemsize
    attn_dtype = q.dtype if attn_dtype is None else jnp.dtype(attn_dtype)
    attn_itemsize = jnp.dtype(attn_dtype).itemsize

    mask_kind, mask_arr = _normalize_mask(mask, B, Lq, Lk)

    tile_budget, vmem_limit = _vmem_budgets()
    if q_tile is None:
        tq = _auto_q_tile(Lq, Lk, Dk, Dv, itemsize, attn_itemsize, mask_kind,
                          _min_q_tile(q.dtype), tile_budget)
    else:
        tq = int(q_tile)
        assert Lq % tq == 0, "q_tile must divide Lq"
    nq = Lq // tq

    # Grid order (B, nq) with nq innermost: k/v block index is constant across
    # the inner nq steps, so their DMA is not re-issued per step.
    grid = (B, nq)
    q_spec = pl.BlockSpec((pl.Squeezed(), tq, Dk), lambda b, i: (b, i, 0))
    k_spec = pl.BlockSpec((pl.Squeezed(), Lk, Dk), lambda b, i: (b, 0, 0))
    v_spec = pl.BlockSpec((pl.Squeezed(), Lk, Dv), lambda b, i: (b, 0, 0))
    o_spec = pl.BlockSpec((pl.Squeezed(), tq, Dv), lambda b, i: (b, i, 0))
    a_spec = pl.BlockSpec((pl.Squeezed(), tq, Lk), lambda b, i: (b, i, 0))

    out_shape = (
        jax.ShapeDtypeStruct((B, Lq, Dv), q.dtype),     # output
        jax.ShapeDtypeStruct((B, Lq, Lk), attn_dtype),  # attn
    )

    compiler_params = pltpu.CompilerParams(
        dimension_semantics=("parallel", "parallel"),
        vmem_limit_bytes=vmem_limit,
    )

    if mask_kind == "none":
        kernel = functools.partial(_sdpa_kernel, inv_temperature=inv_temperature)
        in_specs = [q_spec, k_spec, v_spec]
        args = (q, k, v)
    else:
        kernel = functools.partial(_sdpa_kernel_masked,
                                   inv_temperature=inv_temperature)
        if mask_kind == "key":
            # Resident per batch, like k/v: Lk int8 bytes per batch element.
            m_spec = pl.BlockSpec((pl.Squeezed(), 1, Lk), lambda b, i: (b, 0, 0))
        else:
            m_spec = pl.BlockSpec((pl.Squeezed(), tq, Lk), lambda b, i: (b, i, 0))
        in_specs = [q_spec, k_spec, v_spec, m_spec]
        args = (q, k, v, mask_arr)

    return pl.pallas_call(
        kernel,
        out_shape=out_shape,
        grid=grid,
        in_specs=in_specs,
        out_specs=(o_spec, a_spec),
        compiler_params=compiler_params,
    )(*args)


# --------------------------------------------------------------------------- #
# Pure-JAX reference + tests
# --------------------------------------------------------------------------- #
def _reference(q, k, v, temperature, mask=None):
    attn = jnp.einsum("bqd,bkd->bqk",
                      q.astype(jnp.float32), k.astype(jnp.float32)) / temperature
    if mask is not None:
        m = jnp.asarray(mask, dtype=bool)
        if m.ndim == 2:
            m = m[:, None, :]
        m = jnp.broadcast_to(m, attn.shape)
        attn = jnp.where(m, -jnp.inf, attn)
    attn = jax.nn.softmax(attn, axis=-1)
    out = jnp.einsum("bqk,bkd->bqd", attn, v.astype(jnp.float32))
    return out, attn


if __name__ == "__main__":
    key = jax.random.PRNGKey(0)
    kq, kk, kv = jax.random.split(key, 3)

    # --- Test 1: lane/sublane-aligned shapes, multi-tile Lq grid, no mask ----
    B, Lq, Lk, Dk, Dv = 2, 256, 256, 64, 64
    temperature = math.sqrt(Dk)
    q = jax.random.normal(kq, (B, Lq, Dk), dtype=jnp.float32)
    k = jax.random.normal(kk, (B, Lk, Dk), dtype=jnp.float32)
    v = jax.random.normal(kv, (B, Lk, Dv), dtype=jnp.float32)

    out, attn = scaled_dot_product_attention(q, k, v, temperature,
                                             mask=None, q_tile=128)
    out, attn = jax.block_until_ready((out, attn))
    ref_out, ref_attn = _reference(q, k, v, temperature, mask=None)
    assert out.shape == (B, Lq, Dv) and attn.shape == (B, Lq, Lk)
    assert jnp.allclose(out, ref_out, atol=2e-3, rtol=2e-3)
    assert jnp.allclose(attn, ref_attn, atol=2e-3, rtol=2e-3)

    # --- Test 2: key-padding mask in its natural (B, 1, Lk) shape ------------
    key_mask = jnp.zeros((B, 1, Lk), dtype=bool).at[:, :, (3 * Lk) // 4:].set(True)
    out_m, attn_m = scaled_dot_product_attention(q, k, v, temperature,
                                                 mask=key_mask, q_tile=128)
    out_m, attn_m = jax.block_until_ready((out_m, attn_m))
    ref_out_m, ref_attn_m = _reference(q, k, v, temperature, mask=key_mask)
    assert jnp.allclose(out_m, ref_out_m, atol=2e-3, rtol=2e-3)
    assert jnp.allclose(attn_m, ref_attn_m, atol=2e-3, rtol=2e-3)
    assert jnp.allclose(attn_m[:, :, (3 * Lk) // 4:], 0.0)

    # --- Test 3: full (B, Lq, Lk) per-query mask ------------------------------
    full_mask = jnp.zeros((B, Lq, Lk), dtype=bool).at[:, Lq // 2:, Lk // 2:].set(True)
    out_f, attn_f = scaled_dot_product_attention(q, k, v, temperature,
                                                 mask=full_mask, q_tile=128)
    out_f, attn_f = jax.block_until_ready((out_f, attn_f))
    ref_out_f, ref_attn_f = _reference(q, k, v, temperature, mask=full_mask)
    assert jnp.allclose(out_f, ref_out_f, atol=2e-3, rtol=2e-3)
    assert jnp.allclose(attn_f, ref_attn_f, atol=2e-3, rtol=2e-3)

    # --- Test 4: tiny, non-128-aligned shapes (auto tiler, single Lq tile) ---
    B2, L2, D2 = 2, 8, 32
    q2 = jax.random.normal(kq, (B2, L2, D2), dtype=jnp.float32)
    k2 = jax.random.normal(kk, (B2, L2, D2), dtype=jnp.float32)
    v2 = jax.random.normal(kv, (B2, L2, D2), dtype=jnp.float32)
    out2, attn2 = scaled_dot_product_attention(q2, k2, v2, math.sqrt(D2), mask=None)
    out2, attn2 = jax.block_until_ready((out2, attn2))
    ref_out2, ref_attn2 = _reference(q2, k2, v2, math.sqrt(D2), mask=None)
    assert jnp.allclose(out2, ref_out2, atol=2e-3, rtol=2e-3)
    assert jnp.allclose(attn2, ref_attn2, atol=2e-3, rtol=2e-3)

    print("KERNEL_OK")
</pallas_src>

<mosaic_0001>
module attributes {stable_mosaic.version = 11 : i64} {
  func.func @_sdpa_kernel(%arg0: i32, %arg1: i32, %arg2: memref<1x128x64xf32, #tpu.memory_space<vmem>>, %arg3: memref<1x256x64xf32, #tpu.memory_space<vmem>>, %arg4: memref<1x256x64xf32, #tpu.memory_space<vmem>>, %arg5: memref<1x128x64xf32, #tpu.memory_space<vmem>>, %arg6: memref<1x128x256xf32, #tpu.memory_space<vmem>>) attributes {dimension_semantics = [#tpu.dimension_semantics<parallel>, #tpu.dimension_semantics<parallel>], iteration_bounds = array<i64: 2, 2>, scalar_prefetch = 0 : i64, scratch_operands = 0 : i64, tpu.core_type = #tpu.core_type<tc>, window_params = [{transform_indices = @transform_0, window_bounds = array<i64: 1, 128, 64>}, {transform_indices = @transform_1, window_bounds = array<i64: 1, 256, 64>}, {transform_indices = @transform_2, window_bounds = array<i64: 1, 256, 64>}, {transform_indices = @transform_3, window_bounds = array<i64: 1, 128, 64>}, {transform_indices = @transform_4, window_bounds = array<i64: 1, 128, 256>}]} {
    %c0 = arith.constant 0 : index
    %c0_0 = arith.constant 0 : index
    %c0_1 = arith.constant 0 : index
    %0 = vector.load %arg2[%c0, %c0_0, %c0_1] : memref<1x128x64xf32, #tpu.memory_space<vmem>>, vector<1x128x64xf32>
    %1 = vector.shape_cast %0 : vector<1x128x64xf32> to vector<128x64xf32>
    %c0_2 = arith.constant 0 : index
    %c0_3 = arith.constant 0 : index
    %c0_4 = arith.constant 0 : index
    %2 = vector.load %arg3[%c0_2, %c0_3, %c0_4] : memref<1x256x64xf32, #tpu.memory_space<vmem>>, vector<1x256x64xf32>
    %3 = vector.shape_cast %2 : vector<1x256x64xf32> to vector<256x64xf32>
    %c0_5 = arith.constant 0 : index
    %c0_6 = arith.constant 0 : index
    %c0_7 = arith.constant 0 : index
    %4 = vector.load %arg4[%c0_5, %c0_6, %c0_7] : memref<1x256x64xf32, #tpu.memory_space<vmem>>, vector<1x256x64xf32>
    %5 = vector.shape_cast %4 : vector<1x256x64xf32> to vector<256x64xf32>
    %cst = arith.constant 1.250000e-01 : f32
    %6 = vector.broadcast %cst : f32 to vector<128x64xf32>
    %7 = arith.mulf %1, %6 : vector<128x64xf32>
    %cst_8 = arith.constant dense<0.000000e+00> : vector<128x256xf32>
    %8 = tpu.matmul %7, %3, %cst_8 {dimension_numbers = #tpu.dot_dimension_numbers<[1], [1], [0], [0], [0, 0, 1, 0], [], []>} : vector<128x64xf32>, vector<256x64xf32>, vector<128x256xf32> -> vector<128x256xf32>
    %cst_9 = arith.constant dense<0xFF800000> : vector<128xf32>
    %9 = vector.multi_reduction <maximumf>, %8, %cst_9 [1] : vector<128x256xf32> to vector<128xf32>
    %10 = vector.shape_cast %9 : vector<128xf32> to vector<128x1xf32>
    %11 = vector.broadcast %10 : vector<128x1xf32> to vector<128x256xf32>
    %12 = arith.subf %8, %11 : vector<128x256xf32>
    %13 = math.exp %12 : vector<128x256xf32>
    %cst_10 = arith.constant dense<0.000000e+00> : vector<128xf32>
    %14 = vector.multi_reduction <add>, %13, %cst_10 [1] : vector<128x256xf32> to vector<128xf32>
    %15 = vector.shape_cast %14 : vector<128xf32> to vector<128x1xf32>
    %16 = tpu.reciprocal %15 {approx = true} : vector<128x1xf32> -> vector<128x1xf32>
    %17 = vector.broadcast %16 : vector<128x1xf32> to vector<128x256xf32>
    %18 = arith.mulf %13, %17 : vector<128x256xf32>
    %c0_11 = arith.constant 0 : index
    %c0_12 = arith.constant 0 : index
    %c0_13 = arith.constant 0 : index
    %19 = vector.load %arg6[%c0_11, %c0_12, %c0_13] : memref<1x128x256xf32, #tpu.memory_space<vmem>>, vector<1x128x256xf32>
    %20 = vector.shape_cast %19 : vector<1x128x256xf32> to vector<128x256xf32>
    %21 = vector.shape_cast %18 : vector<128x256xf32> to vector<1x128x256xf32>
    tpu.vector_store %arg6[%c0_11, %c0_12, %c0_13], %21 {strides = array<i32>} : memref<1x128x256xf32, #tpu.memory_space<vmem>>, vector<1x128x256xf32>,
    %cst_14 = arith.constant dense<0.000000e+00> : vector<128x64xf32>
    %22 = tpu.matmul %18, %5, %cst_14 {dimension_numbers = #tpu.dot_dimension_numbers<[1], [0], [0], [1], [0, 0, 1, 1], [], []>} : vector<128x256xf32>, vector<256x64xf32>, vector<128x64xf32> -> vector<128x64xf32>
    %c0_15 = arith.constant 0 : index
    %c0_16 = arith.constant 0 : index
    %c0_17 = arith.constant 0 : index
    %23 = vector.load %arg5[%c0_15, %c0_16, %c0_17] : memref<1x128x64xf32, #tpu.memory_space<vmem>>, vector<1x128x64xf32>
    %24 = vector.shape_cast %23 : vector<1x128x64xf32> to vector<128x64xf32>
    %25 = vector.shape_cast %22 : vector<128x64xf32> to vector<1x128x64xf32>
    tpu.vector_store %arg5[%c0_15, %c0_16, %c0_17], %25 {strides = array<i32>} : memref<1x128x64xf32, #tpu.memory_space<vmem>>, vector<1x128x64xf32>,
    return
  }
  func.func @transform_0(%arg0: i32, %arg1: i32) -> (i32, i32, i32) {
    %c0_i32 = arith.constant 0 : i32
    %c0_i32_0 = arith.constant 0 : i32
    return %arg0, %arg1, %c0_i32 : i32, i32, i32
  }
  func.func @transform_1(%arg0: i32, %arg1: i32) -> (i32, i32, i32) {
    %c0_i32 = arith.constant 0 : i32
    %c0_i32_0 = arith.constant 0 : i32
    %c0_i32_1 = arith.constant 0 : i32
    return %arg0, %c0_i32, %c0_i32_0 : i32, i32, i32
  }
  func.func @transform_2(%arg0: i32, %arg1: i32) -> (i32, i32, i32) {
    %c0_i32 = arith.constant 0 : i32
    %c0_i32_0 = arith.constant 0 : i32
    %c0_i32_1 = arith.constant 0 : i32
    return %arg0, %c0_i32, %c0_i32_0 : i32, i32, i32
  }
  func.func @transform_3(%arg0: i32, %arg1: i32) -> (i32, i32, i32) {
    %c0_i32 = arith.constant 0 : i32
    %c0_i32_0 = arith.constant 0 : i32
    return %arg0, %arg1, %c0_i32 : i32, i32, i32
  }
  func.func @transform_4(%arg0: i32, %arg1: i32) -> (i32, i32, i32) {
    %c0_i32 = arith.constant 0 : i32
    %c0_i32_0 = arith.constant 0 : i32
    return %arg0, %arg1, %c0_i32 : i32, i32, i32
  }
}

</mosaic_0001>

<llo_original>
// kernel: tpu_custom_call.1
$region0: #{tpu_custom_call.1}
  #allocation0 [shape = 'u32[]', space=smem, size = 0x4, offset = 0x4, fixed_abs, tag = 'smem constant byte address 0x4 - core index']
  #allocation1 [shape = 'u32[72,128]{1,0:T(1,128)}', space=vmem, size = 0x9000, scoped, tag = 'internal scratch']
  %s0 = inlined_call_operand.vmem [shape: f32[2,256,64], index: 0, kind: input, shape index: {}]
  %s1 = inlined_call_operand.vmem [shape: f32[2,256,64], index: 1, kind: input, shape index: {}]
  %s2 = inlined_call_operand.vmem [shape: f32[2,256,64], index: 2, kind: input, shape index: {}]
  %s3 = inlined_call_operand.vmem [shape: f32[2,256,64], index: 3, kind: output, shape index: {0}]
  %s4 = inlined_call_operand.hbm [shape: f32[2,256,256], index: 4, kind: output, shape index: {1}]
  %5 = xla_tuple %s3, %s4
  %s6 = sld [smem:[#allocation0]]
  $region53: #{tpu_custom_call.1} parent=0
    _
  %s8 = ssub.s32 1, %s6
  %s9 = scalar_select 0, %s8, %s6
  $region1: #{tpu_custom_call.1} parent=0
    #allocation2 [shape = 'u8[262144]{0}', space=vmem, size = 0x40000, scoped, tag = 'output window, operand 1']
    #allocation3 [shape = 's32[2]{0}', space=sflag, size = 0x8, scoped, tag = 'scoped memory for tpu_custom_call.1']
    %10 = vsyncpa [#allocation3], 0
    %s11 = scalar_lea.sflag [#allocation3], 1
    %12 = vsyncpa %s11, 0
    loop: start=0, step=1, limit=6
    $region2: #{tpu_custom_call.1} parent=1 // loop_pre_header
      _
    $region3: #{tpu_custom_call.1} parent=1 // loop_header
      %s14 = sphi 0, %s18
      %p15 = scmp.ge.s32.totalorder %s14, 6
      %s21 = sphi 0, %s33
      %s22 = sphi 0, %s29
      %s23 = sphi 0, %s21
      %s24 = sphi 0, %s22
      %s25 = sphi 0, %s23
      %s26 = sphi 0, %s24
      %s38 = sphi 0, %s40
      %s41 = sphi 0, %s38
      %s42 = sphi 0, %s41
      %s58 = sphi 0, %s42
      %s64 = sphi 0, %s66
      %s67 = sphi 0, %s64
      %s68 = sphi 0, %s67
      %s84 = sphi 0, %s68
      %s90 = sphi 0, %s92
      %s93 = sphi 0, %s90
      %s94 = sphi 0, %s93
      %s110 = sphi 0, %s94
      %s118 = sphi 0, %s120
      %s121 = sphi 0, %s118
      %s122 = sphi 0, %s121
      %s138 = sphi 0, %s122
      %s146 = sphi 0, %s148
      %s149 = sphi 0, %s146
      %s150 = sphi 0, %s149
      %s166 = sphi 0, %s150
    $region4: #{tpu_custom_call.1} parent=1 // loop_header_branch
      %17 = sbr.rel (%p15) target = $region8
    $region5: #{tpu_custom_call.1} parent=1 // loop_body
      %s19 = ssub.s32 %s14, 1
      %s20 = ssub.s32 %s14, 2
      %s27 = sadd.s32 1, %s22
      %p28 = scmp.ge.s32.totalorder %s27, 2
      %s29 = scalar_select %p28, 0, %s27
      %s30 = sadd.s32 1, %s21
      %s31 = scalar_select %p28, %s30, %s21
      %p32 = scmp.ge.s32.totalorder %s31, 2
      %s33 = scalar_select %p32, 0, %s31
      %s34 = ssub.s32 %s21, %s33
      %s35 = ssub.s32 %s22, %s29
      %s36 = sor.u32 %s34, %s35
      %p37 = scmp.eq.s32.totalorder %s36, 0
      %s39 = sadd.s32 %s38, 1
      %s40 = scalar_select %p37, %s38, %s39
      %p43 = pneg %p37
      %p44 = scmp.eq.s32.totalorder %s14, 3
      %p45 = por %p43, %p44
      %p46 = scmp.ne.s32.totalorder %s38, %s41
      %p47 = scmp.eq.s32.totalorder %s14, 0
      %p48 = por %p46, %p47
      %p49 = scmp.ne.s32.totalorder %s38, %s41
      %p50 = scmp.eq.s32.totalorder %s19, 3
      %p51 = por %p49, %p50
      %p52 = scmp.ne.s32.totalorder %s41, %s42
      %p53 = scmp.eq.s32.totalorder %s19, 0
      %p54 = por %p52, %p53
      %p55 = scmp.ne.s32.totalorder %s41, %s42
      %p56 = scmp.eq.s32.totalorder %s20, 3
      %p57 = por %p55, %p56
      %p59 = scmp.ne.s32.totalorder %s42, %s58
      %p60 = scmp.eq.s32.totalorder %s20, 0
      %p61 = por %p59, %p60
      %s62 = ssub.s32 %s21, %s33
      %p63 = scmp.eq.s32.totalorder %s62, 0
      %s65 = sadd.s32 %s64, 1
      %s66 = scalar_select %p63, %s64, %s65
      %p69 = pneg %p63
      %p70 = scmp.eq.s32.totalorder %s14, 3
      %p71 = por %p69, %p70
      %p72 = scmp.ne.s32.totalorder %s64, %s67
      %p73 = scmp.eq.s32.totalorder %s14, 0
      %p74 = por %p72, %p73
      %p75 = scmp.ne.s32.totalorder %s64, %s67
      %p76 = scmp.eq.s32.totalorder %s19, 3
      %p77 = por %p75, %p76
      %p78 = scmp.ne.s32.totalorder %s67, %s68
      %p79 = scmp.eq.s32.totalorder %s19, 0
      %p80 = por %p78, %p79
      %p81 = scmp.ne.s32.totalorder %s67, %s68
      %p82 = scmp.eq.s32.totalorder %s20, 3
      %p83 = por %p81, %p82
      %p85 = scmp.ne.s32.totalorder %s68, %s84
      %p86 = scmp.eq.s32.totalorder %s20, 0
      %p87 = por %p85, %p86
      %s88 = ssub.s32 %s21, %s33
      %p89 = scmp.eq.s32.totalorder %s88, 0
      %s91 = sadd.s32 %s90, 1
      %s92 = scalar_select %p89, %s90, %s91
      %p95 = pneg %p89
      %p96 = scmp.eq.s32.totalorder %s14, 3
      %p97 = por %p95, %p96
      %p98 = scmp.ne.s32.totalorder %s90, %s93
      %p99 = scmp.eq.s32.totalorder %s14, 0
      %p100 = por %p98, %p99
      %p101 = scmp.ne.s32.totalorder %s90, %s93
      %p102 = scmp.eq.s32.totalorder %s19, 3
      %p103 = por %p101, %p102
      %p104 = scmp.ne.s32.totalorder %s93, %s94
      %p105 = scmp.eq.s32.totalorder %s19, 0
      %p106 = por %p104, %p105
      %p107 = scmp.ne.s32.totalorder %s93, %s94
      %p108 = scmp.eq.s32.totalorder %s20, 3
      %p109 = por %p107, %p108
      %p111 = scmp.ne.s32.totalorder %s94, %s110
      %p112 = scmp.eq.s32.totalorder %s20, 0
      %p113 = por %p111, %p112
      %s114 = ssub.s32 %s21, %s33
      %s115 = ssub.s32 %s22, %s29
      %s116 = sor.u32 %s114, %s115
      %p117 = scmp.eq.s32.totalorder %s116, 0
      %s119 = sadd.s32 %s118, 1
      %s120 = scalar_select %p117, %s118, %s119
      %p123 = pneg %p117
      %p124 = scmp.eq.s32.totalorder %s14, 3
      %p125 = por %p123, %p124
      %p126 = scmp.ne.s32.totalorder %s118, %s121
      %p127 = scmp.eq.s32.totalorder %s14, 0
      %p128 = por %p126, %p127
      %p129 = scmp.ne.s32.totalorder %s118, %s121
      %p130 = scmp.eq.s32.totalorder %s19, 3
      %p131 = por %p129, %p130
      %p132 = scmp.ne.s32.totalorder %s121, %s122
      %p133 = scmp.eq.s32.totalorder %s19, 0
      %p134 = por %p132, %p133
      %p135 = scmp.ne.s32.totalorder %s121, %s122
      %p136 = scmp.eq.s32.totalorder %s20, 3
      %p137 = por %p135, %p136
      %p139 = scmp.ne.s32.totalorder %s122, %s138
      %p140 = scmp.eq.s32.totalorder %s20, 0
      %p141 = por %p139, %p140
      %s142 = ssub.s32 %s21, %s33
      %s143 = ssub.s32 %s22, %s29
      %s144 = sor.u32 %s142, %s143
      %p145 = scmp.eq.s32.totalorder %s144, 0
      %s147 = sadd.s32 %s146, 1
      %s148 = scalar_select %p145, %s146, %s147
      %p151 = pneg %p145
      %p152 = scmp.eq.s32.totalorder %s14, 3
      %p153 = por %p151, %p152
      %p154 = scmp.ne.s32.totalorder %s146, %s149
      %p155 = scmp.eq.s32.totalorder %s14, 0
      %p156 = por %p154, %p155
      %p157 = scmp.ne.s32.totalorder %s146, %s149
      %p158 = scmp.eq.s32.totalorder %s19, 3
      %p159 = por %p157, %p158
      %p160 = scmp.ne.s32.totalorder %s149, %s150
      %p161 = scmp.eq.s32.totalorder %s19, 0
      %p162 = por %p160, %p161
      %p163 = scmp.ne.s32.totalorder %s149, %s150
      %p164 = scmp.eq.s32.totalorder %s20, 3
      %p165 = por %p163, %p164
      %p167 = scmp.ne.s32.totalorder %s150, %s166
      %p168 = scmp.eq.s32.totalorder %s20, 0
      %p169 = por %p167, %p168
      %p170 = scmp.le.s32.totalorder 1, %s14
      %p171 = scmp.lt.s32.totalorder %s14, 5
      %p172 = pnand %p170, %p171
      %p173 = pneg %p172
      // Predicated region
      $region9: #{tpu_custom_call.1} parent=5 // pred_check
        _
      $region10: #{tpu_custom_call.1} parent=5 // pred_check_branch
        %175 = sbr.rel (%p172) target = $region12
      $region11: #{tpu_custom_call.1} parent=5 // pred_region
        %s176 = ssub.s32 %s14, 1
      $region12: #{tpu_custom_call.1} parent=5 // pred_fallthru
        _
      %p177 = scmp.lt.s32.totalorder %s14, 4
      // Predicated region
      $region13: #{tpu_custom_call.1} parent=5 // pred_check
        %p178 = pneg %p177
      $region14: #{tpu_custom_call.1} parent=5 // pred_check_branch
        %180 = sbr.rel (%p178) target = $region16
      $region15: #{tpu_custom_call.1} parent=5 // pred_region
        // Predicated region
        $region17: #{tpu_custom_call.1} parent=15 // pred_check
          %p181 = pneg %p48
        $region18: #{tpu_custom_call.1} parent=15 // pred_check_branch
          %183 = sbr.rel (%p181) target = $region20
        $region19: #{tpu_custom_call.1} parent=15 // pred_region
          %s184 = smul.u32 16, %s22
          %p185 = scmp.lt.s32.totalorder %s21, 1
          %s186 = scalar_select %p185, %s21, 1
          %p187 = scmp.lt.s32.totalorder %s184, 31
          %s188 = scalar_select %p187, %s184, 31
          %s189 = smul.addr %s186, 32
          %s190 = sadd.s32 %s188, %s189
          %s191 = smul.addr %s190, 8
          %s192 = scalar_lea.vmem %s0, %s191
          %s193 = smul.u32 16, %s22
        $region20: #{tpu_custom_call.1} parent=15 // pred_fallthru
          _
        // Predicated region
        $region21: #{tpu_custom_call.1} parent=15 // pred_check
          %p194 = pneg %p74
        $region22: #{tpu_custom_call.1} parent=15 // pred_check_branch
          %196 = sbr.rel (%p194) target = $region24
        $region23: #{tpu_custom_call.1} parent=15 // pred_region
          %p197 = scmp.lt.s32.totalorder %s21, 1
          %s198 = scalar_select %p197, %s21, 1
          %s199 = smul.addr %s198, 32
          %s200 = smul.addr %s199, 8
          %s201 = scalar_lea.vmem %s1, %s200
        $region24: #{tpu_custom_call.1} parent=15 // pred_fallthru
          _
        // Predicated region
        $region25: #{tpu_custom_call.1} parent=15 // pred_check
          %p202 = pneg %p100
        $region26: #{tpu_custom_call.1} parent=15 // pred_check_branch
          %204 = sbr.rel (%p202) target = $region28
        $region27: #{tpu_custom_call.1} parent=15 // pred_region
          %p205 = scmp.lt.s32.totalorder %s21, 1
          %s206 = scalar_select %p205, %s21, 1
          %s207 = smul.addr %s206, 32
          %s208 = smul.addr %s207, 8
          %s209 = scalar_lea.vmem %s2, %s208
        $region28: #{tpu_custom_call.1} parent=15 // pred_fallthru
          _
      $region16: #{tpu_custom_call.1} parent=5 // pred_fallthru
        _
      %p210 = scmp.le.s32.totalorder 1, %s14
      %p211 = scmp.lt.s32.totalorder %s14, 5
      %p212 = pnand %p210, %p211
      %p213 = pneg %p212
      // Predicated region
      $region29: #{tpu_custom_call.1} parent=5 // pred_check
        _
      $region30: #{tpu_custom_call.1} parent=5 // pred_check_branch
        %215 = sbr.rel (%p212) target = $region32
      $region31: #{tpu_custom_call.1} parent=5 // pred_region
        %s216 = ssub.s32 %s14, 1
        %s217 = smul.u32 16, %s24
        %p218 = scmp.lt.s32.totalorder %s23, 1
        %s219 = scalar_select %p218, %s23, 1
        %p220 = scmp.lt.s32.totalorder %s217, 31
        %s221 = scalar_select %p220, %s217, 31
        %s222 = smul.addr %s219, 32
        %s223 = sadd.s32 %s221, %s222
        %s224 = smul.addr %s223, 8
        %s225 = scalar_lea.vmem %s0, %s224
        %p226 = pneg %p54
        %p227 = pneg %p51
        %p228 = scmp.lt.s32.totalorder %s23, 1
        %s229 = scalar_select %p228, %s23, 1
        %s230 = smul.addr %s229, 32
        %s231 = smul.addr %s230, 8
        %s232 = scalar_lea.vmem %s1, %s231
        %p233 = pneg %p80
        %p234 = pneg %p77
        %p235 = scmp.lt.s32.totalorder %s23, 1
        %s236 = scalar_select %p235, %s23, 1
        %s237 = smul.addr %s236, 32
        %s238 = smul.addr %s237, 8
        %s239 = scalar_lea.vmem %s2, %s238
        %p240 = pneg %p106
        %p241 = pneg %p103
        %p242 = pneg %p134
        %p243 = pneg %p131
        %s244 = smul.u32 16, %s24
        %p245 = scmp.lt.s32.totalorder %s23, 1
        %s246 = scalar_select %p245, %s23, 1
        %p247 = scmp.lt.s32.totalorder %s244, 31
        %s248 = scalar_select %p247, %s244, 31
        %s249 = smul.addr %s246, 32
        %s250 = sadd.s32 %s248, %s249
        %s251 = smul.addr %s250, 8
        %s252 = scalar_lea.vmem %s3, %s251
        %p253 = pneg %p162
        %p254 = pneg %p159
        %s255 = sand.u32 %s149, 1
        %s256 = scalar_lea.sflag [#allocation3], %s255
        %s257 = sand.u32 %s149, 1
        %s258 = smul.addr %s257, 256
        %s259 = scalar_lea.vmem [#allocation2], %s258
        %s260 = smul.u32 16, %s24
        %p261 = scmp.lt.s32.totalorder %s23, 1
        %s262 = scalar_select %p261, %s23, 1
        %p263 = scmp.lt.s32.totalorder %s260, 31
        %s264 = scalar_select %p263, %s260, 31
        %s265 = smul.addr %s262, 32
        %s266 = sadd.s32 %s264, %s265
        %s267 = smul.addr %s266, 8
        %s268 = scalar_lea.vmem %s0, %s267
        %s269 = smul.u32 16, %s24
        %p270 = scmp.lt.s32.totalorder %s23, 1
        %s271 = scalar_select %p270, %s23, 1
        %s272 = smul.addr %s271, 32
        %s273 = smul.addr %s272, 8
        %s274 = scalar_lea.vmem %s1, %s273
        %p275 = scmp.lt.s32.totalorder %s23, 1
        %s276 = scalar_select %p275, %s23, 1
        %s277 = smul.addr %s276, 32
        %s278 = smul.addr %s277, 8
        %s279 = scalar_lea.vmem %s2, %s278
        %s280 = smul.u32 16, %s24
        %p281 = scmp.lt.s32.totalorder %s23, 1
        %s282 = scalar_select %p281, %s23, 1
        %p283 = scmp.lt.s32.totalorder %s280, 31
        %s284 = scalar_select %p283, %s280, 31
        %s285 = smul.addr %s282, 32
        %s286 = sadd.s32 %s284, %s285
        %s287 = smul.addr %s286, 8
        %s288 = scalar_lea.vmem %s3, %s287
        %s289 = smul.u32 16, %s24
        %s290 = smul.u32 16, %s24
        %v291 = vld [vmem:[%s268] sm:$0xff]
        %v292 = vld [vmem:[%s268 + $0x8] sm:$0xff]
        %v293 = vld [vmem:[%s268 + $0x10] sm:$0xff]
        %v294 = vld [vmem:[%s268 + $0x18] sm:$0xff]
        %v295 = vld [vmem:[%s268 + $0x20] sm:$0xff]
        %v296 = vld [vmem:[%s268 + $0x28] sm:$0xff]
        %v297 = vld [vmem:[%s268 + $0x30] sm:$0xff]
        %v298 = vld [vmem:[%s268 + $0x38] sm:$0xff]
        %v299 = vld [vmem:[%s268 + $0x40] sm:$0xff]
        %v300 = vld [vmem:[%s268 + $0x48] sm:$0xff]
        %v301 = vld [vmem:[%s268 + $0x50] sm:$0xff]
        %v302 = vld [vmem:[%s268 + $0x58] sm:$0xff]
        %v303 = vld [vmem:[%s268 + $0x60] sm:$0xff]
        %v304 = vld [vmem:[%s268 + $0x68] sm:$0xff]
        %v305 = vld [vmem:[%s268 + $0x70] sm:$0xff]
        %v306 = vld [vmem:[%s268 + $0x78] sm:$0xff]
        %v307 = vld [vmem:[%s274] sm:$0xff]
        %v308 = vld [vmem:[%s274 + $0x8] sm:$0xff]
        %v309 = vld [vmem:[%s274 + $0x10] sm:$0xff]
        %v310 = vld [vmem:[%s274 + $0x18] sm:$0xff]
        %v311 = vld [vmem:[%s274 + $0x20] sm:$0xff]
        %v312 = vld [vmem:[%s274 + $0x28] sm:$0xff]
        %v313 = vld [vmem:[%s274 + $0x30] sm:$0xff]
        %v314 = vld [vmem:[%s274 + $0x38] sm:$0xff]
        %v315 = vld [vmem:[%s274 + $0x40] sm:$0xff]
        %v316 = vld [vmem:[%s274 + $0x48] sm:$0xff]
        %v317 = vld [vmem:[%s274 + $0x50] sm:$0xff]
        %v318 = vld [vmem:[%s274 + $0x58] sm:$0xff]
        %v319 = vld [vmem:[%s274 + $0x60] sm:$0xff]
        %v320 = vld [vmem:[%s274 + $0x68] sm:$0xff]
        %v321 = vld [vmem:[%s274 + $0x70] sm:$0xff]
        %v322 = vld [vmem:[%s274 + $0x78] sm:$0xff]
        %v323 = vld [vmem:[%s274 + $0x80] sm:$0xff]
        %v324 = vld [vmem:[%s274 + $0x88] sm:$0xff]
        %v325 = vld [vmem:[%s274 + $0x90] sm:$0xff]
        %v326 = vld [vmem:[%s274 + $0x98] sm:$0xff]
        %v327 = vld [vmem:[%s274 + $0xa0] sm:$0xff]
        %v328 = vld [vmem:[%s274 + $0xa8] sm:$0xff]
        %v329 = vld [vmem:[%s274 + $0xb0] sm:$0xff]
        %v330 = vld [vmem:[%s274 + $0xb8] sm:$0xff]
        %v331 = vld [vmem:[%s274 + $0xc0] sm:$0xff]
        %v332 = vld [vmem:[%s274 + $0xc8] sm:$0xff]
        %v333 = vld [vmem:[%s274 + $0xd0] sm:$0xff]
        %v334 = vld [vmem:[%s274 + $0xd8] sm:$0xff]
        %v335 = vld [vmem:[%s274 + $0xe0] sm:$0xff]
        %v336 = vld [vmem:[%s274 + $0xe8] sm:$0xff]
        %v337 = vld [vmem:[%s274 + $0xf0] sm:$0xff]
        %v338 = vld [vmem:[%s274 + $0xf8] sm:$0xff]
        %v339 = vld [vmem:[%s279] sm:$0xff]
        %v340 = vld [vmem:[%s279 + $0x8] sm:$0xff]
        %v341 = vld [vmem:[%s279 + $0x10] sm:$0xff]
        %v342 = vld [vmem:[%s279 + $0x18] sm:$0xff]
        %v343 = vld [vmem:[%s279 + $0x20] sm:$0xff]
        %v344 = vld [vmem:[%s279 + $0x28] sm:$0xff]
        %v345 = vld [vmem:[%s279 + $0x30] sm:$0xff]
        %v346 = vld [vmem:[%s279 + $0x38] sm:$0xff]
        %v347 = vld [vmem:[%s279 + $0x40] sm:$0xff]
        %v348 = vld [vmem:[%s279 + $0x48] sm:$0xff]
        %v349 = vld [vmem:[%s279 + $0x50] sm:$0xff]
        %v350 = vld [vmem:[%s279 + $0x58] sm:$0xff]
        %v351 = vld [vmem:[%s279 + $0x60] sm:$0xff]
        %v352 = vld [vmem:[%s279 + $0x68] sm:$0xff]
        %v353 = vld [vmem:[%s279 + $0x70] sm:$0xff]
        %v354 = vld [vmem:[%s279 + $0x78] sm:$0xff]
        %v355 = vld [vmem:[%s279 + $0x80] sm:$0xff]
        %v356 = vld [vmem:[%s279 + $0x88] sm:$0xff]
        %v357 = vld [vmem:[%s279 + $0x90] sm:$0xff]
        %v358 = vld [vmem:[%s279 + $0x98] sm:$0xff]
        %v359 = vld [vmem:[%s279 + $0xa0] sm:$0xff]
        %v360 = vld [vmem:[%s279 + $0xa8] sm:$0xff]
        %v361 = vld [vmem:[%s279 + $0xb0] sm:$0xff]
        %v362 = vld [vmem:[%s279 + $0xb8] sm:$0xff]
        %v363 = vld [vmem:[%s279 + $0xc0] sm:$0xff]
        %v364 = vld [vmem:[%s279 + $0xc8] sm:$0xff]
        %v365 = vld [vmem:[%s279 + $0xd0] sm:$0xff]
        %v366 = vld [vmem:[%s279 + $0xd8] sm:$0xff]
        %v367 = vld [vmem:[%s279 + $0xe0] sm:$0xff]
        %v368 = vld [vmem:[%s279 + $0xe8] sm:$0xff]
        %v369 = vld [vmem:[%s279 + $0xf0] sm:$0xff]
        %v370 = vld [vmem:[%s279 + $0xf8] sm:$0xff]
        %v371 = vmul.f32 %v291, 0.125
        %v372 = vmul.f32 %v292, 0.125
        %v373 = vmul.f32 %v293, 0.125
        %v374 = vmul.f32 %v294, 0.125
        %v375 = vmul.f32 %v295, 0.125
        %v376 = vmul.f32 %v296, 0.125
        %v377 = vmul.f32 %v297, 0.125
        %v378 = vmul.f32 %v298, 0.125
        %v379 = vmul.f32 %v299, 0.125
        %v380 = vmul.f32 %v300, 0.125
        %v381 = vmul.f32 %v301, 0.125
        %v382 = vmul.f32 %v302, 0.125
        %v383 = vmul.f32 %v303, 0.125
        %v384 = vmul.f32 %v304, 0.125
        %v385 = vmul.f32 %v305, 0.125
        %v386 = vmul.f32 %v306, 0.125
        %vm387 = vcmask 523264
        %v389 = vsel %vm387, %v371, 0
        %v392 = vsel %vm387, %v372, 0
        %v395 = vsel %vm387, %v373, 0
        %v398 = vsel %vm387, %v374, 0
        %v401 = vsel %vm387, %v375, 0
        %v404 = vsel %vm387, %v376, 0
        %v407 = vsel %vm387, %v377, 0
        %v410 = vsel %vm387, %v378, 0
        %v413 = vsel %vm387, %v379, 0
        %v416 = vsel %vm387, %v380, 0
        %v419 = vsel %vm387, %v381, 0
        %v422 = vsel %vm387, %v382, 0
        %v425 = vsel %vm387, %v383, 0
        %v428 = vsel %vm387, %v384, 0
        %v431 = vsel %vm387, %v385, 0
        %v434 = vsel %vm387, %v386, 0
        %v437 = vsel %vm387, %v307, 0
        %v440 = vsel %vm387, %v308, 0
        %v443 = vsel %vm387, %v309, 0
        %v446 = vsel %vm387, %v310, 0
        %v449 = vsel %vm387, %v311, 0
        %v452 = vsel %vm387, %v312, 0
        %v455 = vsel %vm387, %v313, 0
        %v458 = vsel %vm387, %v314, 0
        %v461 = vsel %vm387, %v315, 0
        %v464 = vsel %vm387, %v316, 0
        %v467 = vsel %vm387, %v317, 0
        %v470 = vsel %vm387, %v318, 0
        %v473 = vsel %vm387, %v319, 0
        %v476 = vsel %vm387, %v320, 0
        %v479 = vsel %vm387, %v321, 0
        %v482 = vsel %vm387, %v322, 0
        %v485 = vsel %vm387, %v323, 0
        %v488 = vsel %vm387, %v324, 0
        %v491 = vsel %vm387, %v325, 0
        %v494 = vsel %vm387, %v326, 0
        %v497 = vsel %vm387, %v327, 0
        %v500 = vsel %vm387, %v328, 0
        %v503 = vsel %vm387, %v329, 0
        %v506 = vsel %vm387, %v330, 0
        %v509 = vsel %vm387, %v331, 0
        %v512 = vsel %vm387, %v332, 0
        %v515 = vsel %vm387, %v333, 0
        %v518 = vsel %vm387, %v334, 0
        %v521 = vsel %vm387, %v335, 0
        %v524 = vsel %vm387, %v336, 0
        %v527 = vsel %vm387, %v337, 0
        %v530 = vsel %vm387, %v338, 0
        %532 = vmatpush.xpose.msra.mxu0 %v482
        %533 = vmatpush.xpose.msra.mxu0 %v479
        %534 = vmatpush.xpose.msra.mxu0 %v476
        %535 = vmatpush.xpose.msra.mxu0 %v473
        %536 = vmatpush.xpose.msra.mxu0 %v470
        %537 = vmatpush.xpose.msra.mxu0 %v467
        %538 = vmatpush.xpose.msra.mxu0 %v464
        %539 = vmatpush.xpose.msra.mxu0 %v461
        %540 = vmatpush.xpose.msra.mxu0 %v458
        %541 = vmatpush.xpose.msra.mxu0 %v455
        %542 = vmatpush.xpose.msra.mxu0 %v452
        %543 = vmatpush.xpose.msra.mxu0 %v449
        %544 = vmatpush.xpose.msra.mxu0 %v446
        %545 = vmatpush.xpose.msra.mxu0 %v443
        %546 = vmatpush.xpose.msra.mxu0 %v440
        %547 = vmatpush.xpose.msra.mxu0 %v437
        %548 = vmatmul.f32.gmra.mxu0 %v389
        %v549 = vpop.f32.mrf.mxu0
        %v550 = vadd.f32 0.0, %v549
        %551 = vmatmul.f32.gmra.mxu0 %v392
        %v552 = vpop.f32.mrf.mxu0
        %v553 = vadd.f32 0.0, %v552
        %554 = vmatmul.f32.gmra.mxu0 %v395
        %v555 = vpop.f32.mrf.mxu0
        %v556 = vadd.f32 0.0, %v555
        %557 = vmatmul.f32.gmra.mxu0 %v398
        %v558 = vpop.f32.mrf.mxu0
        %v559 = vadd.f32 0.0, %v558
        %560 = vmatmul.f32.gmra.mxu0 %v401
        %v561 = vpop.f32.mrf.mxu0
        %v562 = vadd.f32 0.0, %v561
        %563 = vmatmul.f32.gmra.mxu0 %v404
        %v564 = vpop.f32.mrf.mxu0
        %v565 = vadd.f32 0.0, %v564
        %566 = vmatmul.f32.gmra.mxu0 %v407
        %v567 = vpop.f32.mrf.mxu0
        %v568 = vadd.f32 0.0, %v567
        %569 = vmatmul.f32.gmra.mxu0 %v410
        %v570 = vpop.f32.mrf.mxu0
        %v571 = vadd.f32 0.0, %v570
        %572 = vmatmul.f32.gmra.mxu0 %v413
        %v573 = vpop.f32.mrf.mxu0
        %v574 = vadd.f32 0.0, %v573
        %575 = vmatmul.f32.gmra.mxu0 %v416
        %v576 = vpop.f32.mrf.mxu0
        %v577 = vadd.f32 0.0, %v576
        %578 = vmatmul.f32.gmra.mxu0 %v419
        %v579 = vpop.f32.mrf.mxu0
        %v580 = vadd.f32 0.0, %v579
        %581 = vmatmul.f32.gmra.mxu0 %v422
        %v582 = vpop.f32.mrf.mxu0
        %v583 = vadd.f32 0.0, %v582
        %584 = vmatmul.f32.gmra.mxu0 %v425
        %v585 = vpop.f32.mrf.mxu0
        %v586 = vadd.f32 0.0, %v585
        %587 = vmatmul.f32.gmra.mxu0 %v428
        %v588 = vpop.f32.mrf.mxu0
        %v589 = vadd.f32 0.0, %v588
        %590 = vmatmul.f32.gmra.mxu0 %v431
        %v591 = vpop.f32.mrf.mxu0
        %v592 = vadd.f32 0.0, %v591
        %593 = vmatmul.f32.gmra.mxu0 %v434
        %v594 = vpop.f32.mrf.mxu0
        %v595 = vadd.f32 0.0, %v594
        %596 = vdwg.mxu0
        %597 = vmatpush.xpose.msra.mxu0 %v530
        %598 = vmatpush.xpose.msra.mxu0 %v527
        %599 = vmatpush.xpose.msra.mxu0 %v524
        %600 = vmatpush.xpose.msra.mxu0 %v521
        %601 = vmatpush.xpose.msra.mxu0 %v518
        %602 = vmatpush.xpose.msra.mxu0 %v515
        %603 = vmatpush.xpose.msra.mxu0 %v512
        %604 = vmatpush.xpose.msra.mxu0 %v509
        %605 = vmatpush.xpose.msra.mxu0 %v506
        %606 = vmatpush.xpose.msra.mxu0 %v503
        %607 = vmatpush.xpose.msra.mxu0 %v500
        %608 = vmatpush.xpose.msra.mxu0 %v497
        %609 = vmatpush.xpose.msra.mxu0 %v494
        %610 = vmatpush.xpose.msra.mxu0 %v491
        %611 = vmatpush.xpose.msra.mxu0 %v488
        %612 = vmatpush.xpose.msra.mxu0 %v485
        %613 = vmatmul.f32.gmra.mxu0 %v389
        %v614 = vpop.f32.mrf.mxu0
        %v615 = vadd.f32 0.0, %v614
        %616 = vmatmul.f32.gmra.mxu0 %v392
        %v617 = vpop.f32.mrf.mxu0
        %v618 = vadd.f32 0.0, %v617
        %619 = vmatmul.f32.gmra.mxu0 %v395
        %v620 = vpop.f32.mrf.mxu0
        %v621 = vadd.f32 0.0, %v620
        %622 = vmatmul.f32.gmra.mxu0 %v398
        %v623 = vpop.f32.mrf.mxu0
        %v624 = vadd.f32 0.0, %v623
        %625 = vmatmul.f32.gmra.mxu0 %v401
        %v626 = vpop.f32.mrf.mxu0
        %v627 = vadd.f32 0.0, %v626
        %628 = vmatmul.f32.gmra.mxu0 %v404
        %v629 = vpop.f32.mrf.mxu0
        %v630 = vadd.f32 0.0, %v629
        %631 = vmatmul.f32.gmra.mxu0 %v407
        %v632 = vpop.f32.mrf.mxu0
        %v633 = vadd.f32 0.0, %v632
        %634 = vmatmul.f32.gmra.mxu0 %v410
        %v635 = vpop.f32.mrf.mxu0
        %v636 = vadd.f32 0.0, %v635
        %637 = vmatmul.f32.gmra.mxu0 %v413
        %v638 = vpop.f32.mrf.mxu0
        %v639 = vadd.f32 0.0, %v638
        %640 = vmatmul.f32.gmra.mxu0 %v416
        %v641 = vpop.f32.mrf.mxu0
        %v642 = vadd.f32 0.0, %v641
        %643 = vmatmul.f32.gmra.mxu0 %v419
        %v644 = vpop.f32.mrf.mxu0
        %v645 = vadd.f32 0.0, %v644
        %646 = vmatmul.f32.gmra.mxu0 %v422
        %v647 = vpop.f32.mrf.mxu0
        %v648 = vadd.f32 0.0, %v647
        %649 = vmatmul.f32.gmra.mxu0 %v425
        %v650 = vpop.f32.mrf.mxu0
        %v651 = vadd.f32 0.0, %v650
        %652 = vmatmul.f32.gmra.mxu0 %v428
        %v653 = vpop.f32.mrf.mxu0
        %v654 = vadd.f32 0.0, %v653
        %655 = vmatmul.f32.gmra.mxu0 %v431
        %v656 = vpop.f32.mrf.mxu0
        %v657 = vadd.f32 0.0, %v656
        %658 = vmatmul.f32.gmra.mxu0 %v434
        %v659 = vpop.f32.mrf.mxu0
        %v660 = vadd.f32 0.0, %v659
        %661 = vdwg.mxu0
        %v662 = vmax.f32 %v550, %v615
        %663 = vmax.xlane.f32.xlu0 %v662
        %v664 = vpop.xlane.xlu0 %663
        %v665 = vmax.f32 %v553, %v618
        %666 = vmax.xlane.f32.xlu0 %v665
        %v667 = vpop.xlane.xlu0 %666
        %v668 = vmax.f32 %v556, %v621
        %669 = vmax.xlane.f32.xlu0 %v668
        %v670 = vpop.xlane.xlu0 %669
        %v671 = vmax.f32 %v559, %v624
        %672 = vmax.xlane.f32.xlu0 %v671
        %v673 = vpop.xlane.xlu0 %672
        %v674 = vmax.f32 %v562, %v627
        %675 = vmax.xlane.f32.xlu0 %v674
        %v676 = vpop.xlane.xlu0 %675
        %v677 = vmax.f32 %v565, %v630
        %678 = vmax.xlane.f32.xlu0 %v677
        %v679 = vpop.xlane.xlu0 %678
        %v680 = vmax.f32 %v568, %v633
        %681 = vmax.xlane.f32.xlu0 %v680
        %v682 = vpop.xlane.xlu0 %681
        %v683 = vmax.f32 %v571, %v636
        %684 = vmax.xlane.f32.xlu0 %v683
        %v685 = vpop.xlane.xlu0 %684
        %v686 = vmax.f32 %v574, %v639
        %687 = vmax.xlane.f32.xlu0 %v686
        %v688 = vpop.xlane.xlu0 %687
        %v689 = vmax.f32 %v577, %v642
        %690 = vmax.xlane.f32.xlu0 %v689
        %v691 = vpop.xlane.xlu0 %690
        %v692 = vmax.f32 %v580, %v645
        %693 = vmax.xlane.f32.xlu0 %v692
        %v694 = vpop.xlane.xlu0 %693
        %v695 = vmax.f32 %v583, %v648
        %696 = vmax.xlane.f32.xlu0 %v695
        %v697 = vpop.xlane.xlu0 %696
        %v698 = vmax.f32 %v586, %v651
        %699 = vmax.xlane.f32.xlu0 %v698
        %v700 = vpop.xlane.xlu0 %699
        %v701 = vmax.f32 %v589, %v654
        %702 = vmax.xlane.f32.xlu0 %v701
        %v703 = vpop.xlane.xlu0 %702
        %v704 = vmax.f32 %v592, %v657
        %705 = vmax.xlane.f32.xlu0 %v704
        %v706 = vpop.xlane.xlu0 %705
        %v707 = vmax.f32 %v595, %v660
        %708 = vmax.xlane.f32.xlu0 %v707
        %v709 = vpop.xlane.xlu0 %708
        %v710 = vsub.f32 %v550, %v664
        %v711 = vsub.f32 %v615, %v664
        %v712 = vsub.f32 %v553, %v667
        %v713 = vsub.f32 %v618, %v667
        %v714 = vsub.f32 %v556, %v670
        %v715 = vsub.f32 %v621, %v670
        %v716 = vsub.f32 %v559, %v673
        %v717 = vsub.f32 %v624, %v673
        %v718 = vsub.f32 %v562, %v676
        %v719 = vsub.f32 %v627, %v676
        %v720 = vsub.f32 %v565, %v679
        %v721 = vsub.f32 %v630, %v679
        %v722 = vsub.f32 %v568, %v682
        %v723 = vsub.f32 %v633, %v682
        %v724 = vsub.f32 %v571, %v685
        %v725 = vsub.f32 %v636, %v685
        %v726 = vsub.f32 %v574, %v688
        %v727 = vsub.f32 %v639, %v688
        %v728 = vsub.f32 %v577, %v691
        %v729 = vsub.f32 %v642, %v691
        %v730 = vsub.f32 %v580, %v694
        %v731 = vsub.f32 %v645, %v694
        %v732 = vsub.f32 %v583, %v697
        %v733 = vsub.f32 %v648, %v697
        %v734 = vsub.f32 %v586, %v700
        %v735 = vsub.f32 %v651, %v700
        %v736 = vsub.f32 %v589, %v703
        %v737 = vsub.f32 %v654, %v703
        %v738 = vsub.f32 %v592, %v706
        %v739 = vsub.f32 %v657, %v706
        %v740 = vsub.f32 %v595, %v709
        %v741 = vsub.f32 %v660, %v709
        %v742 = vmul.f32 %v710, 1.442695
        %v743 = vpow.pop %v742
        %v744 = vmul.f32 %v711, 1.442695
        %v745 = vpow.pop %v744
        %v746 = vmul.f32 %v712, 1.442695
        %v747 = vpow.pop %v746
        %v748 = vmul.f32 %v713, 1.442695
        %v749 = vpow.pop %v748
        %v750 = vmul.f32 %v714, 1.442695
        %v751 = vpow.pop %v750
        %v752 = vmul.f32 %v715, 1.442695
        %v753 = vpow.pop %v752
        %v754 = vmul.f32 %v716, 1.442695
        %v755 = vpow.pop %v754
        %v756 = vmul.f32 %v717, 1.442695
        %v757 = vpow.pop %v756
        %v758 = vmul.f32 %v718, 1.442695
        %v759 = vpow.pop %v758
        %v760 = vmul.f32 %v719, 1.442695
        %v761 = vpow.pop %v760
        %v762 = vmul.f32 %v720, 1.442695
        %v763 = vpow.pop %v762
        %v764 = vmul.f32 %v721, 1.442695
        %v765 = vpow.pop %v764
        %v766 = vmul.f32 %v722, 1.442695
        %v767 = vpow.pop %v766
        %v768 = vmul.f32 %v723, 1.442695
        %v769 = vpow.pop %v768
        %v770 = vmul.f32 %v724, 1.442695
        %v771 = vpow.pop %v770
        %v772 = vmul.f32 %v725, 1.442695
        %v773 = vpow.pop %v772
        %v774 = vmul.f32 %v726, 1.442695
        %v775 = vpow.pop %v774
        %v776 = vmul.f32 %v727, 1.442695
        %v777 = vpow.pop %v776
        %v778 = vmul.f32 %v728, 1.442695
        %v779 = vpow.pop %v778
        %v780 = vmul.f32 %v729, 1.442695
        %v781 = vpow.pop %v780
        %v782 = vmul.f32 %v730, 1.442695
        %v783 = vpow.pop %v782
        %v784 = vmul.f32 %v731, 1.442695
        %v785 = vpow.pop %v784
        %v786 = vmul.f32 %v732, 1.442695
        %v787 = vpow.pop %v786
        %v788 = vmul.f32 %v733, 1.442695
        %v789 = vpow.pop %v788
        %v790 = vmul.f32 %v734, 1.442695
        %v791 = vpow.pop %v790
        %v792 = vmul.f32 %v735, 1.442695
        %v793 = vpow.pop %v792
        %v794 = vmul.f32 %v736, 1.442695
        %v795 = vpow.pop %v794
        %v796 = vmul.f32 %v737, 1.442695
        %v797 = vpow.pop %v796
        %v798 = vmul.f32 %v738, 1.442695
        %v799 = vpow.pop %v798
        %v800 = vmul.f32 %v739, 1.442695
        %v801 = vpow.pop %v800
        %v802 = vmul.f32 %v740, 1.442695
        %v803 = vpow.pop %v802
        %v804 = vmul.f32 %v741, 1.442695
        %v805 = vpow.pop %v804
        %v806 = vadd.f32 %v743, %v745
        %807 = vadd.xlane.f32.xlu0 %v806
        %v808 = vpop.xlane.xlu0 %807
        %v809 = vadd.f32 %v747, %v749
        %810 = vadd.xlane.f32.xlu0 %v809
        %v811 = vpop.xlane.xlu0 %810
        %v812 = vadd.f32 %v751, %v753
        %813 = vadd.xlane.f32.xlu0 %v812
        %v814 = vpop.xlane.xlu0 %813
        %v815 = vadd.f32 %v755, %v757
        %816 = vadd.xlane.f32.xlu0 %v815
        %v817 = vpop.xlane.xlu0 %816
        %v818 = vadd.f32 %v759, %v761
        %819 = vadd.xlane.f32.xlu0 %v818
        %v820 = vpop.xlane.xlu0 %819
        %v821 = vadd.f32 %v763, %v765
        %822 = vadd.xlane.f32.xlu0 %v821
        %v823 = vpop.xlane.xlu0 %822
        %v824 = vadd.f32 %v767, %v769
        %825 = vadd.xlane.f32.xlu0 %v824
        %v826 = vpop.xlane.xlu0 %825
        %v827 = vadd.f32 %v771, %v773
        %828 = vadd.xlane.f32.xlu0 %v827
        %v829 = vpop.xlane.xlu0 %828
        %v830 = vadd.f32 %v775, %v777
        %831 = vadd.xlane.f32.xlu0 %v830
        %v832 = vpop.xlane.xlu0 %831
        %v833 = vadd.f32 %v779, %v781
        %834 = vadd.xlane.f32.xlu0 %v833
        %v835 = vpop.xlane.xlu0 %834
        %v836 = vadd.f32 %v783, %v785
        %837 = vadd.xlane.f32.xlu0 %v836
        %v838 = vpop.xlane.xlu0 %837
        %v839 = vadd.f32 %v787, %v789
        %840 = vadd.xlane.f32.xlu0 %v839
        %v841 = vpop.xlane.xlu0 %840
        %v842 = vadd.f32 %v791, %v793
        %843 = vadd.xlane.f32.xlu0 %v842
        %v844 = vpop.xlane.xlu0 %843
        %v845 = vadd.f32 %v795, %v797
        %846 = vadd.xlane.f32.xlu0 %v845
        %v847 = vpop.xlane.xlu0 %846
        %v848 = vadd.f32 %v799, %v801
        %849 = vadd.xlane.f32.xlu0 %v848
        %v850 = vpop.xlane.xlu0 %849
        %v851 = vadd.f32 %v803, %v805
        %852 = vadd.xlane.f32.xlu0 %v851
        %v853 = vpop.xlane.xlu0 %852
        %v854 = vrcp.pop %v808
        %v855 = vrcp.pop %v811
        %v856 = vrcp.pop %v814
        %v857 = vrcp.pop %v817
        %v858 = vrcp.pop %v820
        %v859 = vrcp.pop %v823
        %v860 = vrcp.pop %v826
        %v861 = vrcp.pop %v829
        %v862 = vrcp.pop %v832
        %v863 = vrcp.pop %v835
        %v864 = vrcp.pop %v838
        %v865 = vrcp.pop %v841
        %v866 = vrcp.pop %v844
        %v867 = vrcp.pop %v847
        %v868 = vrcp.pop %v850
        %v869 = vrcp.pop %v853
        %v870 = vmul.f32 %v743, %v854
        %v871 = vmul.f32 %v745, %v854
        %v872 = vmul.f32 %v747, %v855
        %v873 = vmul.f32 %v749, %v855
        %v874 = vmul.f32 %v751, %v856
        %v875 = vmul.f32 %v753, %v856
        %v876 = vmul.f32 %v755, %v857
        %v877 = vmul.f32 %v757, %v857
        %v878 = vmul.f32 %v759, %v858
        %v879 = vmul.f32 %v761, %v858
        %v880 = vmul.f32 %v763, %v859
        %v881 = vmul.f32 %v765, %v859
        %v882 = vmul.f32 %v767, %v860
        %v883 = vmul.f32 %v769, %v860
        %v884 = vmul.f32 %v771, %v861
        %v885 = vmul.f32 %v773, %v861
        %v886 = vmul.f32 %v775, %v862
        %v887 = vmul.f32 %v777, %v862
        %v888 = vmul.f32 %v779, %v863
        %v889 = vmul.f32 %v781, %v863
        %v890 = vmul.f32 %v783, %v864
        %v891 = vmul.f32 %v785, %v864
        %v892 = vmul.f32 %v787, %v865
        %v893 = vmul.f32 %v789, %v865
        %v894 = vmul.f32 %v791, %v866
        %v895 = vmul.f32 %v793, %v866
        %v896 = vmul.f32 %v795, %v867
        %v897 = vmul.f32 %v797, %v867
        %v898 = vmul.f32 %v799, %v868
        %v899 = vmul.f32 %v801, %v868
        %v900 = vmul.f32 %v803, %v869
        %v901 = vmul.f32 %v805, %v869
        %902 = vst [vmem:[%s259] sm:$0xff] %v870
        %903 = vst [vmem:[%s259 + $0x8] sm:$0xff] %v871
        %904 = vst [vmem:[%s259 + $0x10] sm:$0xff] %v872
        %905 = vst [vmem:[%s259 + $0x18] sm:$0xff] %v873
        %906 = vst [vmem:[%s259 + $0x20] sm:$0xff] %v874
        %907 = vst [vmem:[%s259 + $0x28] sm:$0xff] %v875
        %908 = vst [vmem:[%s259 + $0x30] sm:$0xff] %v876
        %909 = vst [vmem:[%s259 + $0x38] sm:$0xff] %v877
        %910 = vst [vmem:[%s259 + $0x40] sm:$0xff] %v878
        %911 = vst [vmem:[%s259 + $0x48] sm:$0xff] %v879
        %912 = vst [vmem:[%s259 + $0x50] sm:$0xff] %v880
        %913 = vst [vmem:[%s259 + $0x58] sm:$0xff] %v881
        %914 = vst [vmem:[%s259 + $0x60] sm:$0xff] %v882
        %915 = vst [vmem:[%s259 + $0x68] sm:$0xff] %v883
        %916 = vst [vmem:[%s259 + $0x70] sm:$0xff] %v884
        %917 = vst [vmem:[%s259 + $0x78] sm:$0xff] %v885
        %918 = vst [vmem:[%s259 + $0x80] sm:$0xff] %v886
        %919 = vst [vmem:[%s259 + $0x88] sm:$0xff] %v887
        %920 = vst [vmem:[%s259 + $0x90] sm:$0xff] %v888
        %921 = vst [vmem:[%s259 + $0x98] sm:$0xff] %v889
        %922 = vst [vmem:[%s259 + $0xa0] sm:$0xff] %v890
        %923 = vst [vmem:[%s259 + $0xa8] sm:$0xff] %v891
        %924 = vst [vmem:[%s259 + $0xb0] sm:$0xff] %v892
        %925 = vst [vmem:[%s259 + $0xb8] sm:$0xff] %v893
        %926 = vst [vmem:[%s259 + $0xc0] sm:$0xff] %v894
        %927 = vst [vmem:[%s259 + $0xc8] sm:$0xff] %v895
        %928 = vst [vmem:[%s259 + $0xd0] sm:$0xff] %v896
        %929 = vst [vmem:[%s259 + $0xd8] sm:$0xff] %v897
        %930 = vst [vmem:[%s259 + $0xe0] sm:$0xff] %v898
        %931 = vst [vmem:[%s259 + $0xe8] sm:$0xff] %v899
        %932 = vst [vmem:[%s259 + $0xf0] sm:$0xff] %v900
        %933 = vst [vmem:[%s259 + $0xf8] sm:$0xff] %v901
        %934 = vmatpush.msra.mxu0 %v354
        %935 = vmatpush.msra.mxu0 %v353
        %936 = vmatpush.msra.mxu0 %v352
        %937 = vmatpush.msra.mxu0 %v351
        %938 = vmatpush.msra.mxu0 %v350
        %939 = vmatpush.msra.mxu0 %v349
        %940 = vmatpush.msra.mxu0 %v348
        %941 = vmatpush.msra.mxu0 %v347
        %942 = vmatpush.msra.mxu0 %v346
        %943 = vmatpush.msra.mxu0 %v345
        %944 = vmatpush.msra.mxu0 %v344
        %945 = vmatpush.msra.mxu0 %v343
        %946 = vmatpush.msra.mxu0 %v342
        %947 = vmatpush.msra.mxu0 %v341
        %948 = vmatpush.msra.mxu0 %v340
        %949 = vmatpush.msra.mxu0 %v339
        %950 = vmatmul.f32.gmra.mxu0 %v870
        %v951 = vpop.f32.mrf.mxu0
        %v952 = vadd.f32 0.0, %v951
        %953 = vmatmul.f32.gmra.mxu0 %v872
        %v954 = vpop.f32.mrf.mxu0
        %v955 = vadd.f32 0.0, %v954
        %956 = vmatmul.f32.gmra.mxu0 %v874
        %v957 = vpop.f32.mrf.mxu0
        %v958 = vadd.f32 0.0, %v957
        %959 = vmatmul.f32.gmra.mxu0 %v876
        %v960 = vpop.f32.mrf.mxu0
        %v961 = vadd.f32 0.0, %v960
        %962 = vmatmul.f32.gmra.mxu0 %v878
        %v963 = vpop.f32.mrf.mxu0
        %v964 = vadd.f32 0.0, %v963
        %965 = vmatmul.f32.gmra.mxu0 %v880
        %v966 = vpop.f32.mrf.mxu0
        %v967 = vadd.f32 0.0, %v966
        %968 = vmatmul.f32.gmra.mxu0 %v882
        %v969 = vpop.f32.mrf.mxu0
        %v970 = vadd.f32 0.0, %v969
        %971 = vmatmul.f32.gmra.mxu0 %v884
        %v972 = vpop.f32.mrf.mxu0
        %v973 = vadd.f32 0.0, %v972
        %974 = vmatmul.f32.gmra.mxu0 %v886
        %v975 = vpop.f32.mrf.mxu0
        %v976 = vadd.f32 0.0, %v975
        %977 = vmatmul.f32.gmra.mxu0 %v888
        %v978 = vpop.f32.mrf.mxu0
        %v979 = vadd.f32 0.0, %v978
        %980 = vmatmul.f32.gmra.mxu0 %v890
        %v981 = vpop.f32.mrf.mxu0
        %v982 = vadd.f32 0.0, %v981
        %983 = vmatmul.f32.gmra.mxu0 %v892
        %v984 = vpop.f32.mrf.mxu0
        %v985 = vadd.f32 0.0, %v984
        %986 = vmatmul.f32.gmra.mxu0 %v894
        %v987 = vpop.f32.mrf.mxu0
        %v988 = vadd.f32 0.0, %v987
        %989 = vmatmul.f32.gmra.mxu0 %v896
        %v990 = vpop.f32.mrf.mxu0
        %v991 = vadd.f32 0.0, %v990
        %992 = vmatmul.f32.gmra.mxu0 %v898
        %v993 = vpop.f32.mrf.mxu0
        %v994 = vadd.f32 0.0, %v993
        %995 = vmatmul.f32.gmra.mxu0 %v900
        %v996 = vpop.f32.mrf.mxu0
        %v997 = vadd.f32 0.0, %v996
        %998 = vdwg.mxu0
        %999 = vmatpush.msra.mxu0 %v370
        %1000 = vmatpush.msra.mxu0 %v369
        %1001 = vmatpush.msra.mxu0 %v368
        %1002 = vmatpush.msra.mxu0 %v367
        %1003 = vmatpush.msra.mxu0 %v366
        %1004 = vmatpush.msra.mxu0 %v365
        %1005 = vmatpush.msra.mxu0 %v364
        %1006 = vmatpush.msra.mxu0 %v363
        %1007 = vmatpush.msra.mxu0 %v362
        %1008 = vmatpush.msra.mxu0 %v361
        %1009 = vmatpush.msra.mxu0 %v360
        %1010 = vmatpush.msra.mxu0 %v359
        %1011 = vmatpush.msra.mxu0 %v358
        %1012 = vmatpush.msra.mxu0 %v357
        %1013 = vmatpush.msra.mxu0 %v356
        %1014 = vmatpush.msra.mxu0 %v355
        %1015 = vmatmul.f32.gmra.mxu0 %v871
        %v1016 = vpop.f32.mrf.mxu0
        %v1017 = vadd.f32 %v952, %v1016
        %1018 = vmatmul.f32.gmra.mxu0 %v873
        %v1019 = vpop.f32.mrf.mxu0
        %v1020 = vadd.f32 %v955, %v1019
        %1021 = vmatmul.f32.gmra.mxu0 %v875
        %v1022 = vpop.f32.mrf.mxu0
        %v1023 = vadd.f32 %v958, %v1022
        %1024 = vmatmul.f32.gmra.mxu0 %v877
        %v1025 = vpop.f32.mrf.mxu0
        %v1026 = vadd.f32 %v961, %v1025
        %1027 = vmatmul.f32.gmra.mxu0 %v879
        %v1028 = vpop.f32.mrf.mxu0
        %v1029 = vadd.f32 %v964, %v1028
        %1030 = vmatmul.f32.gmra.mxu0 %v881
        %v1031 = vpop.f32.mrf.mxu0
        %v1032 = vadd.f32 %v967, %v1031
        %1033 = vmatmul.f32.gmra.mxu0 %v883
        %v1034 = vpop.f32.mrf.mxu0
        %v1035 = vadd.f32 %v970, %v1034
        %1036 = vmatmul.f32.gmra.mxu0 %v885
        %v1037 = vpop.f32.mrf.mxu0
        %v1038 = vadd.f32 %v973, %v1037
        %1039 = vmatmul.f32.gmra.mxu0 %v887
        %v1040 = vpop.f32.mrf.mxu0
        %v1041 = vadd.f32 %v976, %v1040
        %1042 = vmatmul.f32.gmra.mxu0 %v889
        %v1043 = vpop.f32.mrf.mxu0
        %v1044 = vadd.f32 %v979, %v1043
        %1045 = vmatmul.f32.gmra.mxu0 %v891
        %v1046 = vpop.f32.mrf.mxu0
        %v1047 = vadd.f32 %v982, %v1046
        %1048 = vmatmul.f32.gmra.mxu0 %v893
        %v1049 = vpop.f32.mrf.mxu0
        %v1050 = vadd.f32 %v985, %v1049
        %1051 = vmatmul.f32.gmra.mxu0 %v895
        %v1052 = vpop.f32.mrf.mxu0
        %v1053 = vadd.f32 %v988, %v1052
        %1054 = vmatmul.f32.gmra.mxu0 %v897
        %v1055 = vpop.f32.mrf.mxu0
        %v1056 = vadd.f32 %v991, %v1055
        %1057 = vmatmul.f32.gmra.mxu0 %v899
        %v1058 = vpop.f32.mrf.mxu0
        %v1059 = vadd.f32 %v994, %v1058
        %1060 = vmatmul.f32.gmra.mxu0 %v901
        %v1061 = vpop.f32.mrf.mxu0
        %v1062 = vadd.f32 %v997, %v1061
        %1063 = vdwg.mxu0
        %1064 = vst.msk [vmem:[%s288] sm:$0xff] %vm387, %v1017
        %1065 = vst.msk [vmem:[%s288 + $0x8] sm:$0xff] %vm387, %v1020
        %1066 = vst.msk [vmem:[%s288 + $0x10] sm:$0xff] %vm387, %v1023
        %1067 = vst.msk [vmem:[%s288 + $0x18] sm:$0xff] %vm387, %v1026
        %1068 = vst.msk [vmem:[%s288 + $0x20] sm:$0xff] %vm387, %v1029
        %1069 = vst.msk [vmem:[%s288 + $0x28] sm:$0xff] %vm387, %v1032
        %1070 = vst.msk [vmem:[%s288 + $0x30] sm:$0xff] %vm387, %v1035
        %1071 = vst.msk [vmem:[%s288 + $0x38] sm:$0xff] %vm387, %v1038
        %1072 = vst.msk [vmem:[%s288 + $0x40] sm:$0xff] %vm387, %v1041
        %1073 = vst.msk [vmem:[%s288 + $0x48] sm:$0xff] %vm387, %v1044
        %1074 = vst.msk [vmem:[%s288 + $0x50] sm:$0xff] %vm387, %v1047
        %1075 = vst.msk [vmem:[%s288 + $0x58] sm:$0xff] %vm387, %v1050
        %1076 = vst.msk [vmem:[%s288 + $0x60] sm:$0xff] %vm387, %v1053
        %1077 = vst.msk [vmem:[%s288 + $0x68] sm:$0xff] %vm387, %v1056
        %1078 = vst.msk [vmem:[%s288 + $0x70] sm:$0xff] %vm387, %v1059
        %1079 = vst.msk [vmem:[%s288 + $0x78] sm:$0xff] %vm387, %v1062
        %s1080 = smul.u32 16, %s24
        %p1081 = scmp.lt.s32.totalorder %s23, 1
        %s1082 = scalar_select %p1081, %s23, 1
        %p1083 = scmp.lt.s32.totalorder %s1080, 31
        %s1084 = scalar_select %p1083, %s1080, 31
        %s1085 = smul.addr %s1082, 32
        %s1086 = sadd.s32 %s1084, %s1085
        %s1087 = smul.addr %s1086, 8
        %s1088 = scalar_lea.vmem %s3, %s1087
        %s1089 = sand.u32 %s149, 1
        %s1090 = scalar_lea.sflag [#allocation3], %s1089
        %s1091 = sand.u32 %s149, 1
        %s1092 = smul.addr %s1091, 256
        %s1093 = scalar_lea.vmem [#allocation2], %s1092
        // Predicated region
        $region33: #{tpu_custom_call.1} parent=31 // pred_check
          %p1094 = pneg %p131
        $region34: #{tpu_custom_call.1} parent=31 // pred_check_branch
          %1096 = sbr.rel (%p1094) target = $region36
        $region35: #{tpu_custom_call.1} parent=31 // pred_region
          %s1097 = smul.u32 16, %s24
        $region36: #{tpu_custom_call.1} parent=31 // pred_fallthru
          _
        // Predicated region
        $region37: #{tpu_custom_call.1} parent=31 // pred_check
          %p1098 = pneg %p159
        $region38: #{tpu_custom_call.1} parent=31 // pred_check_branch
          %1100 = sbr.rel (%p1098) target = $region40
        $region39: #{tpu_custom_call.1} parent=31 // pred_region
          %s1101 = smul.u32 16, %s24
          %1103 = vsyncadd %s1090, 0
          %s1104 = smul.addr %s1101, 2
          %s1105 = smul.addr %s23, 64
          %s1106 = sadd.s32 %s1104, %s1105
          %s1107 = smul.addr %s1106, 8
          %s1108 = scalar_lea.hbm %s4, %s1107
          %s1109 = sshll.u32 %s1093, 4
          %s1110 = int_to_ptr.vmem [resolvable:$true] %s1109
          %s1111 = sshll.u32 %s1108, 4
          %s1112 = int_to_ptr.hbm [resolvable:$true] %s1111
          %1117 = dma.vmem_to_hbm [thread:$0]  %s1110, 4096, %s1112, %s1090, 256, 256, 16
        $region40: #{tpu_custom_call.1} parent=31 // pred_fallthru
          _
      $region32: #{tpu_custom_call.1} parent=5 // pred_fallthru
        _
      %p1118 = scmp.le.s32.totalorder 2, %s14
      // Predicated region
      $region41: #{tpu_custom_call.1} parent=5 // pred_check
        %p1119 = pneg %p1118
      $region42: #{tpu_custom_call.1} parent=5 // pred_check_branch
        %1121 = sbr.rel (%p1119) target = $region44
      $region43: #{tpu_custom_call.1} parent=5 // pred_region
        %s1122 = ssub.s32 %s14, 2
        // Predicated region
        $region45: #{tpu_custom_call.1} parent=43 // pred_check
          %p1123 = pneg %p137
        $region46: #{tpu_custom_call.1} parent=43 // pred_check_branch
          %1125 = sbr.rel (%p1123) target = $region48
        $region47: #{tpu_custom_call.1} parent=43 // pred_region
          %s1126 = smul.u32 16, %s26
          %p1127 = scmp.lt.s32.totalorder %s25, 1
          %s1128 = scalar_select %p1127, %s25, 1
          %p1129 = scmp.lt.s32.totalorder %s1126, 31
          %s1130 = scalar_select %p1129, %s1126, 31
          %s1131 = smul.addr %s1128, 32
          %s1132 = sadd.s32 %s1130, %s1131
          %s1133 = smul.addr %s1132, 8
          %s1134 = scalar_lea.vmem %s3, %s1133
        $region48: #{tpu_custom_call.1} parent=43 // pred_fallthru
          _
        // Predicated region
        $region49: #{tpu_custom_call.1} parent=43 // pred_check
          %p1135 = pneg %p165
        $region50: #{tpu_custom_call.1} parent=43 // pred_check_branch
          %1137 = sbr.rel (%p1135) target = $region52
        $region51: #{tpu_custom_call.1} parent=43 // pred_region
          %s1138 = sand.u32 %s150, 1
          %s1139 = scalar_lea.sflag [#allocation3], %s1138
          %s1140 = sand.u32 %s150, 1
          %s1141 = smul.addr %s1140, 256
          %s1142 = scalar_lea.vmem [#allocation2], %s1141
          %1144 = dma.done %s1139, 4096
        $region52: #{tpu_custom_call.1} parent=43 // pred_fallthru
          _
      $region44: #{tpu_custom_call.1} parent=5 // pred_fallthru
        _
    $region6: #{tpu_custom_call.1} parent=1 // loop_footer
      %s18 = sadd.s32 1, %s14
    $region7: #{tpu_custom_call.1} parent=1 // loop_footer_branch
      %13 = sbr.rel target = $region3
    $region8: #{tpu_custom_call.1} parent=1 // loop_exit
      _
    %1145 = vsyncpa [#allocation3], 1
    %s1146 = scalar_lea.sflag [#allocation3], 1
    %1147 = vsyncpa %s1146, 1

</llo_original>
